<compile_context>
chip_gen: v7x
topology: tpu7x:2x2x1
jax: 0.10.0
libtpu: 0.0.40
codegen_flags: <defaults>
</compile_context>

<pallas_src>
import jax
import jax.numpy as jnp
from jax import lax
from jax.experimental import pallas as pl
from jax.experimental.pallas import tpu as pltpu

_SUBLANE = 8
_LANE = 128
_LANES_FLAT = 1024                       # lane-dense width of the flattened view
_MAX_BLOCK_BYTES = 4 * 1024 * 1024       # per-input block; x2 inputs x2 buffers = 16 MiB
_VMEM_LIMIT_BYTES = 32 * 1024 * 1024


def _round_up(n, m):
    return ((n + m - 1) // m) * m


def _make_mse_partial_kernel(rows, cols, tile_r, tile_c, mask_rows, mask_cols):
    """Kernel: per-(tile_r, tile_c) block, write an (8, 128) partial-sum tile."""
    n_bands = tile_r // _SUBLANE
    assert n_bands >= 2 and n_bands % 2 == 0
    n_fold = tile_c // _LANE
    unroll = 2 if n_bands >= 4 else 1

    def kernel(x_ref, y_ref, out_ref):
        i = pl.program_id(0)
        j = pl.program_id(1)
        row0 = i * tile_r
        col0 = j * tile_c

        # Column-validity mask is band-invariant: build it once per block.
        if mask_cols:
            col_ok = (col0 + lax.broadcasted_iota(
                jnp.int32, (_SUBLANE, tile_c), 1)) < cols
        else:
            col_ok = None

        def band_sq(r):
            # Stream one 8-row band straight from the refs: no full-tile temp.
            xb = x_ref[pl.ds(r, _SUBLANE), :].astype(jnp.float32)
            yb = y_ref[pl.ds(r, _SUBLANE), :].astype(jnp.float32)
            d = xb - yb
            sq = d * d
            ok = None
            if mask_rows:
                row_ids = (row0 + r) + lax.broadcasted_iota(
                    jnp.int32, (_SUBLANE, tile_c), 0)
                ok = row_ids < rows
            if mask_cols:
                ok = col_ok if ok is None else (ok & col_ok)
            if ok is not None:
                # where() (select) keeps any garbage in the OOB region out of
                # the sum even if it is NaN/Inf.
                sq = jnp.where(ok, sq, 0.0)
            return sq

        def body(t, accs):
            a0, a1 = accs
            r = pl.multiple_of(t * (2 * _SUBLANE), 2 * _SUBLANE)
            a0 = a0 + band_sq(r)
            a1 = a1 + band_sq(r + _SUBLANE)
            return a0, a1

        zero = jnp.zeros((_SUBLANE, tile_c), jnp.float32)
        acc0, acc1 = lax.fori_loop(0, n_bands // 2, body, (zero, zero),
                                   unroll=unroll)
        acc = acc0 + acc1

        # Fold the (8, tile_c) accumulator into a lane-dense (8, 128) partial
        # using 128-aligned lane slices (pure VPU adds, no XLU reduce).
        folded = acc[:, 0:_LANE]
        for k in range(1, n_fold):
            folded = folded + acc[:, k * _LANE:(k + 1) * _LANE]
        out_ref[...] = folded

    return kernel


def reconstruction_loss(x, h, y, *, min_kernel_elems=1 << 18):
    """Unsupervised reconstruction loss: mean((x - y)**2).

    Args:
      x: [B, D] original feature.
      h: [B, H] hash code of the feature (unused, kept for interface parity).
      y: [B, D] reconstructed feature.
      min_kernel_elems: below this element count use plain XLA (kernel launch
        overhead would dominate for tiny problems).
    Returns:
      scalar float32 loss.
    """
    del h  # not used by the reconstruction term (matches base-class contract)
    assert x.shape == y.shape and x.ndim == 2
    B, D = x.shape
    n_total = B * D

    if n_total < min_kernel_elems or n_total == 0:
        return jnp.mean((x.astype(jnp.float32) - y.astype(jnp.float32)) ** 2)

    # Choose the 2-D view.  When B*D divides by 1024, flatten (free reshape,
    # no HBM copy) into a lane-dense (N/1024, 1024) stream so tiling is
    # independent of B/D; otherwise keep [B, D] and mask the ragged tail.
    if n_total % _LANES_FLAT == 0:
        rows, cols = n_total // _LANES_FLAT, _LANES_FLAT
        xv = x.reshape(rows, cols)
        yv = y.reshape(rows, cols)
    else:
        rows, cols = B, D
        xv, yv = x, y

    itemsize = jnp.dtype(x.dtype).itemsize
    # Lane tile: always a multiple of 128 so the folded partial is (8, 128).
    tile_c = min(_round_up(cols, _LANE), _LANES_FLAT)
    # Row tile: dtype-aware alignment (16 rows for >=2-byte dtypes, 32 for
    # 1-byte) keeps packed sub-32-bit layouts clean and the band count even.
    r_align = max(2 * _SUBLANE, 32 // max(itemsize, 1))
    cap = max(r_align,
              (_MAX_BLOCK_BYTES // (tile_c * itemsize)) // r_align * r_align)
    tile_r = min(_round_up(rows, r_align), cap)
    n_r = pl.cdiv(rows, tile_r)
    # v7x has two TensorCores: make sure the parallel grid has >= 2 row tiles
    # whenever the row count allows it.
    if n_r < 2 and rows > r_align:
        tile_r = min(_round_up(pl.cdiv(rows, 2), r_align), cap)
        n_r = pl.cdiv(rows, tile_r)
    n_c = pl.cdiv(cols, tile_c)

    mask_rows = (rows % tile_r) != 0
    mask_cols = (cols % tile_c) != 0

    kernel = _make_mse_partial_kernel(rows, cols, tile_r, tile_c,
                                      mask_rows, mask_cols)

    partials = pl.pallas_call(
        kernel,
        out_shape=jax.ShapeDtypeStruct((n_r * _SUBLANE, n_c * _LANE),
                                       jnp.float32),
        grid_spec=pltpu.PrefetchScalarGridSpec(
            num_scalar_prefetch=0,
            grid=(n_r, n_c),
            in_specs=[
                pl.BlockSpec((tile_r, tile_c), lambda i, j: (i, j)),
                pl.BlockSpec((tile_r, tile_c), lambda i, j: (i, j)),
            ],
            out_specs=pl.BlockSpec((_SUBLANE, _LANE), lambda i, j: (i, j)),
        ),
        compiler_params=pltpu.CompilerParams(
            dimension_semantics=("parallel", "parallel"),
            vmem_limit_bytes=_VMEM_LIMIT_BYTES,
        ),
    )(xv, yv)

    return jnp.sum(partials) / jnp.float32(n_total)


if __name__ == "__main__":
    key = jax.random.PRNGKey(0)
    kx, ky, kh = jax.random.split(key, 3)

    # Feature dim 4096 -> hash dim 64, matching the module docstring.
    B, D, H = 16, 4096, 64
    x = jax.random.normal(kx, (B, D), dtype=jnp.float32)
    y = x + 0.1 * jax.random.normal(ky, (B, D), dtype=jnp.float32)
    h = jnp.sign(jax.random.normal(kh, (B, H), dtype=jnp.float32))

    # 1) Flattened, fully aligned path (no masking, 2 parallel row tiles).
    loss = jax.block_until_ready(reconstruction_loss(x, h, y, min_kernel_elems=0))
    ref = jnp.mean((x - y) ** 2)
    assert jnp.allclose(loss, ref, rtol=1e-5, atol=1e-6), (loss, ref)

    # 2) Flattened path with a ragged last row tile (exercises row masking).
    x2 = jax.random.normal(kx, (40, 1024), dtype=jnp.float32)
    y2 = 0.5 * jax.random.normal(ky, (40, 1024), dtype=jnp.float32)
    loss2 = jax.block_until_ready(
        reconstruction_loss(x2, None, y2, min_kernel_elems=0))
    ref2 = jnp.mean((x2 - y2) ** 2)
    assert jnp.allclose(loss2, ref2, rtol=1e-5, atol=1e-6), (loss2, ref2)

    # 3) Non-flattenable shape with a ragged last column tile (column masking).
    x3 = jax.random.normal(ky, (32, 5000), dtype=jnp.float32)
    y3 = x3 + 0.2 * jax.random.normal(kx, (32, 5000), dtype=jnp.float32)
    loss3 = jax.block_until_ready(
        reconstruction_loss(x3, None, y3, min_kernel_elems=0))
    ref3 = jnp.mean((x3 - y3) ** 2)
    assert jnp.allclose(loss3, ref3, rtol=1e-5, atol=1e-6), (loss3, ref3)

    # 4) Tiny-problem XLA fallback path (default threshold).
    loss4 = jax.block_until_ready(
        reconstruction_loss(x[:2, :256], h[:2], y[:2, :256]))
    ref4 = jnp.mean((x[:2, :256] - y[:2, :256]) ** 2)
    assert jnp.allclose(loss4, ref4, rtol=1e-5, atol=1e-6), (loss4, ref4)

    print("KERNEL_OK")
</pallas_src>

<mosaic_0001>
module attributes {stable_mosaic.version = 11 : i64} {
  func.func @kernel(%arg0: i32, %arg1: i32, %arg2: memref<32x1024xf32, #tpu.memory_space<vmem>>, %arg3: memref<32x1024xf32, #tpu.memory_space<vmem>>, %arg4: memref<8x128xf32, #tpu.memory_space<vmem>>) attributes {dimension_semantics = [#tpu.dimension_semantics<parallel>, #tpu.dimension_semantics<parallel>], iteration_bounds = array<i64: 2, 1>, scalar_prefetch = 0 : i64, scratch_operands = 0 : i64, tpu.core_type = #tpu.core_type<tc>, window_params = [{transform_indices = @transform_0, window_bounds = array<i64: 32, 1024>}, {transform_indices = @transform_1, window_bounds = array<i64: 32, 1024>}, {transform_indices = @transform_2, window_bounds = array<i64: 8, 128>}]} {
    %cst = arith.constant 0.000000e+00 : f32
    %0 = vector.broadcast %cst : f32 to vector<8x1024xf32>
    %c0_i32 = arith.constant 0 : i32
    %c16_i32 = arith.constant 16 : i32
    %1 = arith.muli %c0_i32, %c16_i32 : i32
    %2 = tpu.assume_multiple %1, 16 : i32
    %3 = arith.index_cast %2 : i32 to index
    %c0 = arith.constant 0 : index
    %4 = vector.load %arg2[%3, %c0] : memref<32x1024xf32, #tpu.memory_space<vmem>>, vector<8x1024xf32>
    %5 = arith.index_cast %2 : i32 to index
    %c0_0 = arith.constant 0 : index
    %6 = vector.load %arg3[%5, %c0_0] : memref<32x1024xf32, #tpu.memory_space<vmem>>, vector<8x1024xf32>
    %7 = arith.subf %4, %6 : vector<8x1024xf32>
    %8 = arith.mulf %7, %7 : vector<8x1024xf32>
    %9 = arith.addf %0, %8 : vector<8x1024xf32>
    %c8_i32 = arith.constant 8 : i32
    %10 = arith.addi %2, %c8_i32 : i32
    %11 = arith.index_cast %10 : i32 to index
    %c0_1 = arith.constant 0 : index
    %12 = vector.load %arg2[%11, %c0_1] : memref<32x1024xf32, #tpu.memory_space<vmem>>, vector<8x1024xf32>
    %13 = arith.index_cast %10 : i32 to index
    %c0_2 = arith.constant 0 : index
    %14 = vector.load %arg3[%13, %c0_2] : memref<32x1024xf32, #tpu.memory_space<vmem>>, vector<8x1024xf32>
    %15 = arith.subf %12, %14 : vector<8x1024xf32>
    %16 = arith.mulf %15, %15 : vector<8x1024xf32>
    %17 = arith.addf %0, %16 : vector<8x1024xf32>
    %c1_i32 = arith.constant 1 : i32
    %c16_i32_3 = arith.constant 16 : i32
    %18 = arith.muli %c1_i32, %c16_i32_3 : i32
    %19 = tpu.assume_multiple %18, 16 : i32
    %20 = arith.index_cast %19 : i32 to index
    %c0_4 = arith.constant 0 : index
    %21 = vector.load %arg2[%20, %c0_4] : memref<32x1024xf32, #tpu.memory_space<vmem>>, vector<8x1024xf32>
    %22 = arith.index_cast %19 : i32 to index
    %c0_5 = arith.constant 0 : index
    %23 = vector.load %arg3[%22, %c0_5] : memref<32x1024xf32, #tpu.memory_space<vmem>>, vector<8x1024xf32>
    %24 = arith.subf %21, %23 : vector<8x1024xf32>
    %25 = arith.mulf %24, %24 : vector<8x1024xf32>
    %26 = arith.addf %9, %25 : vector<8x1024xf32>
    %c8_i32_6 = arith.constant 8 : i32
    %27 = arith.addi %19, %c8_i32_6 : i32
    %28 = arith.index_cast %27 : i32 to index
    %c0_7 = arith.constant 0 : index
    %29 = vector.load %arg2[%28, %c0_7] : memref<32x1024xf32, #tpu.memory_space<vmem>>, vector<8x1024xf32>
    %30 = arith.index_cast %27 : i32 to index
    %c0_8 = arith.constant 0 : index
    %31 = vector.load %arg3[%30, %c0_8] : memref<32x1024xf32, #tpu.memory_space<vmem>>, vector<8x1024xf32>
    %32 = arith.subf %29, %31 : vector<8x1024xf32>
    %33 = arith.mulf %32, %32 : vector<8x1024xf32>
    %34 = arith.addf %17, %33 : vector<8x1024xf32>
    %c2_i32 = arith.constant 2 : i32
    %35 = arith.addf %26, %34 : vector<8x1024xf32>
    %36 = vector.extract_strided_slice %35 {offsets = [0, 0], sizes = [8, 128], strides = [1, 1]} : vector<8x1024xf32> to vector<8x128xf32>
    %37 = vector.extract_strided_slice %35 {offsets = [0, 128], sizes = [8, 128], strides = [1, 1]} : vector<8x1024xf32> to vector<8x128xf32>
    %38 = arith.addf %36, %37 : vector<8x128xf32>
    %39 = vector.extract_strided_slice %35 {offsets = [0, 256], sizes = [8, 128], strides = [1, 1]} : vector<8x1024xf32> to vector<8x128xf32>
    %40 = arith.addf %38, %39 : vector<8x128xf32>
    %41 = vector.extract_strided_slice %35 {offsets = [0, 384], sizes = [8, 128], strides = [1, 1]} : vector<8x1024xf32> to vector<8x128xf32>
    %42 = arith.addf %40, %41 : vector<8x128xf32>
    %43 = vector.extract_strided_slice %35 {offsets = [0, 512], sizes = [8, 128], strides = [1, 1]} : vector<8x1024xf32> to vector<8x128xf32>
    %44 = arith.addf %42, %43 : vector<8x128xf32>
    %45 = vector.extract_strided_slice %35 {offsets = [0, 640], sizes = [8, 128], strides = [1, 1]} : vector<8x1024xf32> to vector<8x128xf32>
    %46 = arith.addf %44, %45 : vector<8x128xf32>
    %47 = vector.extract_strided_slice %35 {offsets = [0, 768], sizes = [8, 128], strides = [1, 1]} : vector<8x1024xf32> to vector<8x128xf32>
    %48 = arith.addf %46, %47 : vector<8x128xf32>
    %49 = vector.extract_strided_slice %35 {offsets = [0, 896], sizes = [8, 128], strides = [1, 1]} : vector<8x1024xf32> to vector<8x128xf32>
    %50 = arith.addf %48, %49 : vector<8x128xf32>
    %c0_9 = arith.constant 0 : index
    %c0_10 = arith.constant 0 : index
    %51 = vector.load %arg4[%c0_9, %c0_10] : memref<8x128xf32, #tpu.memory_space<vmem>>, vector<8x128xf32>
    tpu.vector_store %arg4[%c0_9, %c0_10], %50 {strides = array<i32>} : memref<8x128xf32, #tpu.memory_space<vmem>>, vector<8x128xf32>,
    return
  }
  func.func @transform_0(%arg0: i32, %arg1: i32) -> (i32, i32) {
    %c0_i32 = arith.constant 0 : i32
    return %arg0, %arg1 : i32, i32
  }
  func.func @transform_1(%arg0: i32, %arg1: i32) -> (i32, i32) {
    %c0_i32 = arith.constant 0 : i32
    return %arg0, %arg1 : i32, i32
  }
  func.func @transform_2(%arg0: i32, %arg1: i32) -> (i32, i32) {
    %c0_i32 = arith.constant 0 : i32
    return %arg0, %arg1 : i32, i32
  }
}

</mosaic_0001>

<llo_original>
// kernel: tpu_custom_call.1
$region0: #{tpu_custom_call.1}
  #allocation0 [shape = 'u32[]', space=smem, size = 0x4, offset = 0x4, fixed_abs, tag = 'smem constant byte address 0x4 - core index']
  #allocation1 [shape = 'u32[144,128]{1,0:T(1,128)}', space=vmem, size = 0x12000, scoped, tag = 'internal scratch']
  %s0 = inlined_call_operand.hbm [shape: f32[64,1024], index: 0, kind: input, shape index: {}]
  %s1 = inlined_call_operand.hbm [shape: f32[64,1024], index: 1, kind: input, shape index: {}]
  %s2 = inlined_call_operand.hbm [shape: f32[16,128], index: 2, kind: output, shape index: {}]
  %s3 = sld [smem:[#allocation0]]
  $region49: #{tpu_custom_call.1} parent=0
    _
  %s5 = ssub.s32 1, %s3
  %s6 = scalar_select 0, %s5, %s3
  $region1: #{tpu_custom_call.1} parent=0
    #allocation2 [shape = 'u8[262144]{0}', space=vmem, size = 0x40000, scoped, tag = 'input window, operand 0']
    #allocation3 [shape = 's32[2]{0}', space=sflag, size = 0x8, scoped, tag = 'scoped memory for tpu_custom_call.1']
    #allocation4 [shape = 's32[2]{0}', space=sflag, size = 0x8, scoped, tag = 'scoped memory for tpu_custom_call.1']
    #allocation5 [shape = 'u8[262144]{0}', space=vmem, size = 0x40000, scoped, tag = 'input window, operand 1']
    #allocation6 [shape = 's32[2]{0}', space=sflag, size = 0x8, scoped, tag = 'scoped memory for tpu_custom_call.1']
    #allocation7 [shape = 'u8[8192]{0}', space=vmem, size = 0x2000, scoped, tag = 'output window, operand 0']
    %7 = vsyncpa [#allocation3], 0
    %s8 = scalar_lea.sflag [#allocation3], 1
    %9 = vsyncpa %s8, 0
    %10 = vsyncpa [#allocation6], 0
    %s11 = scalar_lea.sflag [#allocation6], 1
    %12 = vsyncpa %s11, 0
    %13 = vsyncpa [#allocation4], 0
    %s14 = scalar_lea.sflag [#allocation4], 1
    %15 = vsyncpa %s14, 0
    loop: start=0, step=1, limit=4
    $region2: #{tpu_custom_call.1} parent=1 // loop_pre_header
      _
    $region3: #{tpu_custom_call.1} parent=1 // loop_header
      %s17 = sphi 0, %s21
      %p18 = scmp.ge.s32.totalorder %s17, 4
      %s24 = sphi 0, %s36
      %s25 = sphi 0, %s32
      %s26 = sphi 0, %s24
      %s27 = sphi 0, %s25
      %s28 = sphi 0, %s26
      %s29 = sphi 0, %s27
      %s41 = sphi 0, %s43
      %s44 = sphi 0, %s41
      %s45 = sphi 0, %s44
      %s61 = sphi 0, %s45
      %s69 = sphi 0, %s71
      %s72 = sphi 0, %s69
      %s73 = sphi 0, %s72
      %s89 = sphi 0, %s73
      %s97 = sphi 0, %s99
      %s100 = sphi 0, %s97
      %s101 = sphi 0, %s100
      %s117 = sphi 0, %s101
    $region4: #{tpu_custom_call.1} parent=1 // loop_header_branch
      %20 = sbr.rel (%p18) target = $region8
    $region5: #{tpu_custom_call.1} parent=1 // loop_body
      %s22 = ssub.s32 %s17, 1
      %s23 = ssub.s32 %s17, 2
      %s30 = sadd.s32 1, %s25
      %p31 = scmp.ge.s32.totalorder %s30, 1
      %s32 = scalar_select %p31, 0, %s30
      %s33 = sadd.s32 1, %s24
      %s34 = scalar_select %p31, %s33, %s24
      %p35 = scmp.ge.s32.totalorder %s34, 2
      %s36 = scalar_select %p35, 0, %s34
      %s37 = ssub.s32 %s24, %s36
      %s38 = ssub.s32 %s25, %s32
      %s39 = sor.u32 %s37, %s38
      %p40 = scmp.eq.s32.totalorder %s39, 0
      %s42 = sadd.s32 %s41, 1
      %s43 = scalar_select %p40, %s41, %s42
      %p46 = pneg %p40
      %p47 = scmp.eq.s32.totalorder %s17, 1
      %p48 = por %p46, %p47
      %p49 = scmp.ne.s32.totalorder %s41, %s44
      %p50 = scmp.eq.s32.totalorder %s17, 0
      %p51 = por %p49, %p50
      %p52 = scmp.ne.s32.totalorder %s41, %s44
      %p53 = scmp.eq.s32.totalorder %s22, 1
      %p54 = por %p52, %p53
      %p55 = scmp.ne.s32.totalorder %s44, %s45
      %p56 = scmp.eq.s32.totalorder %s22, 0
      %p57 = por %p55, %p56
      %p58 = scmp.ne.s32.totalorder %s44, %s45
      %p59 = scmp.eq.s32.totalorder %s23, 1
      %p60 = por %p58, %p59
      %p62 = scmp.ne.s32.totalorder %s45, %s61
      %p63 = scmp.eq.s32.totalorder %s23, 0
      %p64 = por %p62, %p63
      %s65 = ssub.s32 %s24, %s36
      %s66 = ssub.s32 %s25, %s32
      %s67 = sor.u32 %s65, %s66
      %p68 = scmp.eq.s32.totalorder %s67, 0
      %s70 = sadd.s32 %s69, 1
      %s71 = scalar_select %p68, %s69, %s70
      %p74 = pneg %p68
      %p75 = scmp.eq.s32.totalorder %s17, 1
      %p76 = por %p74, %p75
      %p77 = scmp.ne.s32.totalorder %s69, %s72
      %p78 = scmp.eq.s32.totalorder %s17, 0
      %p79 = por %p77, %p78
      %p80 = scmp.ne.s32.totalorder %s69, %s72
      %p81 = scmp.eq.s32.totalorder %s22, 1
      %p82 = por %p80, %p81
      %p83 = scmp.ne.s32.totalorder %s72, %s73
      %p84 = scmp.eq.s32.totalorder %s22, 0
      %p85 = por %p83, %p84
      %p86 = scmp.ne.s32.totalorder %s72, %s73
      %p87 = scmp.eq.s32.totalorder %s23, 1
      %p88 = por %p86, %p87
      %p90 = scmp.ne.s32.totalorder %s73, %s89
      %p91 = scmp.eq.s32.totalorder %s23, 0
      %p92 = por %p90, %p91
      %s93 = ssub.s32 %s24, %s36
      %s94 = ssub.s32 %s25, %s32
      %s95 = sor.u32 %s93, %s94
      %p96 = scmp.eq.s32.totalorder %s95, 0
      %s98 = sadd.s32 %s97, 1
      %s99 = scalar_select %p96, %s97, %s98
      %p102 = pneg %p96
      %p103 = scmp.eq.s32.totalorder %s17, 1
      %p104 = por %p102, %p103
      %p105 = scmp.ne.s32.totalorder %s97, %s100
      %p106 = scmp.eq.s32.totalorder %s17, 0
      %p107 = por %p105, %p106
      %p108 = scmp.ne.s32.totalorder %s97, %s100
      %p109 = scmp.eq.s32.totalorder %s22, 1
      %p110 = por %p108, %p109
      %p111 = scmp.ne.s32.totalorder %s100, %s101
      %p112 = scmp.eq.s32.totalorder %s22, 0
      %p113 = por %p111, %p112
      %p114 = scmp.ne.s32.totalorder %s100, %s101
      %p115 = scmp.eq.s32.totalorder %s23, 1
      %p116 = por %p114, %p115
      %p118 = scmp.ne.s32.totalorder %s101, %s117
      %p119 = scmp.eq.s32.totalorder %s23, 0
      %p120 = por %p118, %p119
      %p121 = scmp.le.s32.totalorder 1, %s17
      %p122 = scmp.lt.s32.totalorder %s17, 3
      %p123 = pnand %p121, %p122
      %p124 = pneg %p123
      // Predicated region
      $region9: #{tpu_custom_call.1} parent=5 // pred_check
        _
      $region10: #{tpu_custom_call.1} parent=5 // pred_check_branch
        %126 = sbr.rel (%p123) target = $region12
      $region11: #{tpu_custom_call.1} parent=5 // pred_region
        %s127 = ssub.s32 %s17, 1
      $region12: #{tpu_custom_call.1} parent=5 // pred_fallthru
        _
      %p128 = scmp.lt.s32.totalorder %s17, 2
      // Predicated region
      $region13: #{tpu_custom_call.1} parent=5 // pred_check
        %p129 = pneg %p128
      $region14: #{tpu_custom_call.1} parent=5 // pred_check_branch
        %131 = sbr.rel (%p129) target = $region16
      $region15: #{tpu_custom_call.1} parent=5 // pred_region
        // Predicated region
        $region17: #{tpu_custom_call.1} parent=15 // pred_check
          %p132 = pneg %p51
        $region18: #{tpu_custom_call.1} parent=15 // pred_check_branch
          %134 = sbr.rel (%p132) target = $region20
        $region19: #{tpu_custom_call.1} parent=15 // pred_region
          %s135 = sand.u32 %s41, 1
          %s136 = scalar_lea.sflag [#allocation3], %s135
          %s137 = sand.u32 %s41, 1
          %s138 = smul.addr %s137, 256
          %s139 = scalar_lea.vmem [#allocation2], %s138
          %s140 = smul.u32 4, %s24
          %s141 = smul.u32 8, %s25
          %s143 = ssub.s32 4096, 4096
          %144 = vsyncadd %s136, %s143
          %s145 = smul.addr %s140, 8
          %s146 = sadd.s32 %s141, %s145
          %s147 = smul.addr %s146, 128
          %s148 = scalar_lea.hbm %s0, %s147
          %s149 = sshll.u32 %s139, 4
          %s150 = int_to_ptr.vmem [resolvable:$true] %s149
          %155 = dma.hbm_to_vmem [thread:$0]  %s148, 4096, %s150, %s136, 1024, 1024, 64
        $region20: #{tpu_custom_call.1} parent=15 // pred_fallthru
          _
        // Predicated region
        $region21: #{tpu_custom_call.1} parent=15 // pred_check
          %p156 = pneg %p79
        $region22: #{tpu_custom_call.1} parent=15 // pred_check_branch
          %158 = sbr.rel (%p156) target = $region24
        $region23: #{tpu_custom_call.1} parent=15 // pred_region
          %s159 = sand.u32 %s69, 1
          %s160 = scalar_lea.sflag [#allocation6], %s159
          %s161 = sand.u32 %s69, 1
          %s162 = smul.addr %s161, 256
          %s163 = scalar_lea.vmem [#allocation5], %s162
          %s164 = smul.u32 4, %s24
          %s165 = smul.u32 8, %s25
          %s167 = ssub.s32 4096, 4096
          %168 = vsyncadd %s160, %s167
          %s169 = smul.addr %s164, 8
          %s170 = sadd.s32 %s165, %s169
          %s171 = smul.addr %s170, 128
          %s172 = scalar_lea.hbm %s1, %s171
          %s173 = sshll.u32 %s163, 4
          %s174 = int_to_ptr.vmem [resolvable:$true] %s173
          %179 = dma.hbm_to_vmem [thread:$0]  %s172, 4096, %s174, %s160, 1024, 1024, 64
        $region24: #{tpu_custom_call.1} parent=15 // pred_fallthru
          _
      $region16: #{tpu_custom_call.1} parent=5 // pred_fallthru
        _
      %p180 = scmp.le.s32.totalorder 1, %s17
      %p181 = scmp.lt.s32.totalorder %s17, 3
      %p182 = pnand %p180, %p181
      %p183 = pneg %p182
      // Predicated region
      $region25: #{tpu_custom_call.1} parent=5 // pred_check
        _
      $region26: #{tpu_custom_call.1} parent=5 // pred_check_branch
        %185 = sbr.rel (%p182) target = $region28
      $region27: #{tpu_custom_call.1} parent=5 // pred_region
        %s186 = ssub.s32 %s17, 1
        %s187 = sand.u32 %s44, 1
        %s188 = scalar_lea.sflag [#allocation3], %s187
        %s189 = sand.u32 %s44, 1
        %s190 = smul.addr %s189, 256
        %s191 = scalar_lea.vmem [#allocation2], %s190
        // Predicated region
        $region29: #{tpu_custom_call.1} parent=27 // pred_check
          %p192 = pneg %p57
        $region30: #{tpu_custom_call.1} parent=27 // pred_check_branch
          %194 = sbr.rel (%p192) target = $region32
        $region31: #{tpu_custom_call.1} parent=27 // pred_region
          %195 = dma.done %s188, 4096
        $region32: #{tpu_custom_call.1} parent=27 // pred_fallthru
          _
        %s196 = sand.u32 %s72, 1
        %s197 = scalar_lea.sflag [#allocation6], %s196
        %s198 = sand.u32 %s72, 1
        %s199 = smul.addr %s198, 256
        %s200 = scalar_lea.vmem [#allocation5], %s199
        // Predicated region
        $region33: #{tpu_custom_call.1} parent=27 // pred_check
          %p201 = pneg %p85
        $region34: #{tpu_custom_call.1} parent=27 // pred_check_branch
          %203 = sbr.rel (%p201) target = $region36
        $region35: #{tpu_custom_call.1} parent=27 // pred_region
          %204 = dma.done %s197, 4096
        $region36: #{tpu_custom_call.1} parent=27 // pred_fallthru
          _
        %s205 = sand.u32 %s44, 1
        %s206 = scalar_lea.sflag [#allocation3], %s205
        %s207 = sand.u32 %s44, 1
        %s208 = smul.addr %s207, 256
        %s209 = scalar_lea.vmem [#allocation2], %s208
        %p210 = pneg %p57
        %p211 = pneg %p54
        %s212 = sand.u32 %s72, 1
        %s213 = scalar_lea.sflag [#allocation6], %s212
        %s214 = sand.u32 %s72, 1
        %s215 = smul.addr %s214, 256
        %s216 = scalar_lea.vmem [#allocation5], %s215
        %p217 = pneg %p85
        %p218 = pneg %p82
        %p219 = pneg %p113
        %p220 = pneg %p110
        %s221 = sand.u32 %s100, 1
        %s222 = scalar_lea.sflag [#allocation4], %s221
        %s223 = sand.u32 %s100, 1
        %s224 = smul.addr %s223, 8
        %s225 = scalar_lea.vmem [#allocation7], %s224
        %s226 = smul.u32 4, %s26
        %s227 = smul.u32 8, %s27
        %s228 = smul.u32 4, %s26
        %s229 = smul.u32 8, %s27
        %s230 = smul.u32 0, 8
        %s231 = smul.addr %s230, 8
        %s232 = scalar_lea.vmem %s191, %s231 [#allocation2]
        %v233 = vld [vmem:[%s232] sm:$0xff]
        %v234 = vld [vmem:[%s232 + $0x8] sm:$0xff]
        %v235 = vld [vmem:[%s232 + $0x10] sm:$0xff]
        %v236 = vld [vmem:[%s232 + $0x18] sm:$0xff]
        %v237 = vld [vmem:[%s232 + $0x20] sm:$0xff]
        %v238 = vld [vmem:[%s232 + $0x28] sm:$0xff]
        %v239 = vld [vmem:[%s232 + $0x30] sm:$0xff]
        %v240 = vld [vmem:[%s232 + $0x38] sm:$0xff]
        %s241 = smul.addr %s230, 8
        %s242 = scalar_lea.vmem %s200, %s241 [#allocation5]
        %v243 = vld [vmem:[%s242] sm:$0xff]
        %v244 = vld [vmem:[%s242 + $0x8] sm:$0xff]
        %v245 = vld [vmem:[%s242 + $0x10] sm:$0xff]
        %v246 = vld [vmem:[%s242 + $0x18] sm:$0xff]
        %v247 = vld [vmem:[%s242 + $0x20] sm:$0xff]
        %v248 = vld [vmem:[%s242 + $0x28] sm:$0xff]
        %v249 = vld [vmem:[%s242 + $0x30] sm:$0xff]
        %v250 = vld [vmem:[%s242 + $0x38] sm:$0xff]
        %v251 = vsub.f32 %v233, %v243
        %v252 = vsub.f32 %v234, %v244
        %v253 = vsub.f32 %v235, %v245
        %v254 = vsub.f32 %v236, %v246
        %v255 = vsub.f32 %v237, %v247
        %v256 = vsub.f32 %v238, %v248
        %v257 = vsub.f32 %v239, %v249
        %v258 = vsub.f32 %v240, %v250
        %v259 = vmul.f32 %v251, %v251
        %v260 = vmul.f32 %v252, %v252
        %v261 = vmul.f32 %v253, %v253
        %v262 = vmul.f32 %v254, %v254
        %v263 = vmul.f32 %v255, %v255
        %v264 = vmul.f32 %v256, %v256
        %v265 = vmul.f32 %v257, %v257
        %v266 = vmul.f32 %v258, %v258
        %v267 = vadd.f32 %v259, 0.0
        %v268 = vadd.f32 %v260, 0.0
        %v269 = vadd.f32 %v261, 0.0
        %v270 = vadd.f32 %v262, 0.0
        %v271 = vadd.f32 %v263, 0.0
        %v272 = vadd.f32 %v264, 0.0
        %v273 = vadd.f32 %v265, 0.0
        %v274 = vadd.f32 %v266, 0.0
        %s275 = sadd.s32 0, 8
        %s276 = sshra.s32 %s275, 3
        %s277 = sand.u32 %s275, 7
        %s278 = smul.u32 %s276, 8
        %s279 = smul.addr %s278, 8
        %s280 = scalar_lea.vmem %s191, %s279 [#allocation2]
        %v281 = vld [vmem:[%s280] sm:$0xff]
        %v282 = vld [vmem:[%s280 + $0x8] sm:$0xff]
        %v283 = vld [vmem:[%s280 + $0x10] sm:$0xff]
        %v284 = vld [vmem:[%s280 + $0x18] sm:$0xff]
        %v285 = vld [vmem:[%s280 + $0x20] sm:$0xff]
        %v286 = vld [vmem:[%s280 + $0x28] sm:$0xff]
        %v287 = vld [vmem:[%s280 + $0x30] sm:$0xff]
        %v288 = vld [vmem:[%s280 + $0x38] sm:$0xff]
        %s289 = smul.addr %s278, 8
        %s290 = scalar_lea.vmem %s200, %s289 [#allocation5]
        %v291 = vld [vmem:[%s290] sm:$0xff]
        %v292 = vld [vmem:[%s290 + $0x8] sm:$0xff]
        %v293 = vld [vmem:[%s290 + $0x10] sm:$0xff]
        %v294 = vld [vmem:[%s290 + $0x18] sm:$0xff]
        %v295 = vld [vmem:[%s290 + $0x20] sm:$0xff]
        %v296 = vld [vmem:[%s290 + $0x28] sm:$0xff]
        %v297 = vld [vmem:[%s290 + $0x30] sm:$0xff]
        %v298 = vld [vmem:[%s290 + $0x38] sm:$0xff]
        %v299 = vsub.f32 %v281, %v291
        %v300 = vsub.f32 %v282, %v292
        %v301 = vsub.f32 %v283, %v293
        %v302 = vsub.f32 %v284, %v294
        %v303 = vsub.f32 %v285, %v295
        %v304 = vsub.f32 %v286, %v296
        %v305 = vsub.f32 %v287, %v297
        %v306 = vsub.f32 %v288, %v298
        %v307 = vmul.f32 %v299, %v299
        %v308 = vmul.f32 %v300, %v300
        %v309 = vmul.f32 %v301, %v301
        %v310 = vmul.f32 %v302, %v302
        %v311 = vmul.f32 %v303, %v303
        %v312 = vmul.f32 %v304, %v304
        %v313 = vmul.f32 %v305, %v305
        %v314 = vmul.f32 %v306, %v306
        %v315 = vadd.f32 %v307, 0.0
        %v316 = vadd.f32 %v308, 0.0
        %v317 = vadd.f32 %v309, 0.0
        %v318 = vadd.f32 %v310, 0.0
        %v319 = vadd.f32 %v311, 0.0
        %v320 = vadd.f32 %v312, 0.0
        %v321 = vadd.f32 %v313, 0.0
        %v322 = vadd.f32 %v314, 0.0
        %s323 = smul.u32 2, 8
        %s324 = smul.addr %s323, 8
        %s325 = scalar_lea.vmem %s191, %s324 [#allocation2]
        %v326 = vld [vmem:[%s325] sm:$0xff]
        %v327 = vld [vmem:[%s325 + $0x8] sm:$0xff]
        %v328 = vld [vmem:[%s325 + $0x10] sm:$0xff]
        %v329 = vld [vmem:[%s325 + $0x18] sm:$0xff]
        %v330 = vld [vmem:[%s325 + $0x20] sm:$0xff]
        %v331 = vld [vmem:[%s325 + $0x28] sm:$0xff]
        %v332 = vld [vmem:[%s325 + $0x30] sm:$0xff]
        %v333 = vld [vmem:[%s325 + $0x38] sm:$0xff]
        %s334 = smul.addr %s323, 8
        %s335 = scalar_lea.vmem %s200, %s334 [#allocation5]
        %v336 = vld [vmem:[%s335] sm:$0xff]
        %v337 = vld [vmem:[%s335 + $0x8] sm:$0xff]
        %v338 = vld [vmem:[%s335 + $0x10] sm:$0xff]
        %v339 = vld [vmem:[%s335 + $0x18] sm:$0xff]
        %v340 = vld [vmem:[%s335 + $0x20] sm:$0xff]
        %v341 = vld [vmem:[%s335 + $0x28] sm:$0xff]
        %v342 = vld [vmem:[%s335 + $0x30] sm:$0xff]
        %v343 = vld [vmem:[%s335 + $0x38] sm:$0xff]
        %v344 = vsub.f32 %v326, %v336
        %v345 = vsub.f32 %v327, %v337
        %v346 = vsub.f32 %v328, %v338
        %v347 = vsub.f32 %v329, %v339
        %v348 = vsub.f32 %v330, %v340
        %v349 = vsub.f32 %v331, %v341
        %v350 = vsub.f32 %v332, %v342
        %v351 = vsub.f32 %v333, %v343
        %v352 = vmul.f32 %v344, %v344
        %v353 = vmul.f32 %v345, %v345
        %v354 = vmul.f32 %v346, %v346
        %v355 = vmul.f32 %v347, %v347
        %v356 = vmul.f32 %v348, %v348
        %v357 = vmul.f32 %v349, %v349
        %v358 = vmul.f32 %v350, %v350
        %v359 = vmul.f32 %v351, %v351
        %v360 = vadd.f32 %v267, %v352
        %v361 = vadd.f32 %v268, %v353
        %v362 = vadd.f32 %v269, %v354
        %v363 = vadd.f32 %v270, %v355
        %v364 = vadd.f32 %v271, %v356
        %v365 = vadd.f32 %v272, %v357
        %v366 = vadd.f32 %v273, %v358
        %v367 = vadd.f32 %v274, %v359
        %s368 = sadd.s32 16, 8
        %s369 = sshra.s32 %s368, 3
        %s370 = sand.u32 %s368, 7
        %s371 = smul.u32 %s369, 8
        %s372 = smul.addr %s371, 8
        %s373 = scalar_lea.vmem %s191, %s372 [#allocation2]
        %v374 = vld [vmem:[%s373] sm:$0xff]
        %v375 = vld [vmem:[%s373 + $0x8] sm:$0xff]
        %v376 = vld [vmem:[%s373 + $0x10] sm:$0xff]
        %v377 = vld [vmem:[%s373 + $0x18] sm:$0xff]
        %v378 = vld [vmem:[%s373 + $0x20] sm:$0xff]
        %v379 = vld [vmem:[%s373 + $0x28] sm:$0xff]
        %v380 = vld [vmem:[%s373 + $0x30] sm:$0xff]
        %v381 = vld [vmem:[%s373 + $0x38] sm:$0xff]
        %s382 = smul.addr %s371, 8
        %s383 = scalar_lea.vmem %s200, %s382 [#allocation5]
        %v384 = vld [vmem:[%s383] sm:$0xff]
        %v385 = vld [vmem:[%s383 + $0x8] sm:$0xff]
        %v386 = vld [vmem:[%s383 + $0x10] sm:$0xff]
        %v387 = vld [vmem:[%s383 + $0x18] sm:$0xff]
        %v388 = vld [vmem:[%s383 + $0x20] sm:$0xff]
        %v389 = vld [vmem:[%s383 + $0x28] sm:$0xff]
        %v390 = vld [vmem:[%s383 + $0x30] sm:$0xff]
        %v391 = vld [vmem:[%s383 + $0x38] sm:$0xff]
        %v392 = vsub.f32 %v374, %v384
        %v393 = vsub.f32 %v375, %v385
        %v394 = vsub.f32 %v376, %v386
        %v395 = vsub.f32 %v377, %v387
        %v396 = vsub.f32 %v378, %v388
        %v397 = vsub.f32 %v379, %v389
        %v398 = vsub.f32 %v380, %v390
        %v399 = vsub.f32 %v381, %v391
        %v400 = vmul.f32 %v392, %v392
        %v401 = vmul.f32 %v393, %v393
        %v402 = vmul.f32 %v394, %v394
        %v403 = vmul.f32 %v395, %v395
        %v404 = vmul.f32 %v396, %v396
        %v405 = vmul.f32 %v397, %v397
        %v406 = vmul.f32 %v398, %v398
        %v407 = vmul.f32 %v399, %v399
        %v408 = vadd.f32 %v315, %v400
        %v409 = vadd.f32 %v316, %v401
        %v410 = vadd.f32 %v317, %v402
        %v411 = vadd.f32 %v318, %v403
        %v412 = vadd.f32 %v319, %v404
        %v413 = vadd.f32 %v320, %v405
        %v414 = vadd.f32 %v321, %v406
        %v415 = vadd.f32 %v322, %v407
        %v416 = vadd.f32 %v360, %v408
        %v417 = vadd.f32 %v361, %v409
        %v418 = vadd.f32 %v362, %v410
        %v419 = vadd.f32 %v363, %v411
        %v420 = vadd.f32 %v364, %v412
        %v421 = vadd.f32 %v365, %v413
        %v422 = vadd.f32 %v366, %v414
        %v423 = vadd.f32 %v367, %v415
        %v424 = vadd.f32 %v416, %v417
        %v425 = vadd.f32 %v424, %v418
        %v426 = vadd.f32 %v425, %v419
        %v427 = vadd.f32 %v426, %v420
        %v428 = vadd.f32 %v427, %v421
        %v429 = vadd.f32 %v428, %v422
        %v430 = vadd.f32 %v429, %v423
        %431 = vst [vmem:[%s225] sm:$0xff] %v430
        %s432 = sand.u32 %s100, 1
        %s433 = scalar_lea.sflag [#allocation4], %s432
        %s434 = sand.u32 %s100, 1
        %s435 = smul.addr %s434, 8
        %s436 = scalar_lea.vmem [#allocation7], %s435
        // Predicated region
        $region37: #{tpu_custom_call.1} parent=27 // pred_check
          %p437 = pneg %p110
        $region38: #{tpu_custom_call.1} parent=27 // pred_check_branch
          %439 = sbr.rel (%p437) target = $region40
        $region39: #{tpu_custom_call.1} parent=27 // pred_region
          %s441 = ssub.s32 128, 128
          %442 = vsyncadd %s433, %s441
          %s443 = sadd.s32 %s27, %s26
          %s444 = smul.addr %s443, 128
          %s445 = scalar_lea.hbm %s2, %s444
          %s447 = sshll.u32 %s436, 4
          %s448 = int_to_ptr.vmem [resolvable:$true] %s447
          %450 = dma.vmem_to_hbm [thread:$0]  %s448, 128, %s445, %s433
        $region40: #{tpu_custom_call.1} parent=27 // pred_fallthru
          _
      $region28: #{tpu_custom_call.1} parent=5 // pred_fallthru
        _
      %p451 = scmp.le.s32.totalorder 2, %s17
      // Predicated region
      $region41: #{tpu_custom_call.1} parent=5 // pred_check
        %p452 = pneg %p451
      $region42: #{tpu_custom_call.1} parent=5 // pred_check_branch
        %454 = sbr.rel (%p452) target = $region44
      $region43: #{tpu_custom_call.1} parent=5 // pred_region
        %s455 = ssub.s32 %s17, 2
        // Predicated region
        $region45: #{tpu_custom_call.1} parent=43 // pred_check
          %p456 = pneg %p116
        $region46: #{tpu_custom_call.1} parent=43 // pred_check_branch
          %458 = sbr.rel (%p456) target = $region48
        $region47: #{tpu_custom_call.1} parent=43 // pred_region
          %s459 = sand.u32 %s101, 1
          %s460 = scalar_lea.sflag [#allocation4], %s459
          %s461 = sand.u32 %s101, 1
          %s462 = smul.addr %s461, 8
          %s463 = scalar_lea.vmem [#allocation7], %s462
          %464 = dma.done %s460, 128
        $region48: #{tpu_custom_call.1} parent=43 // pred_fallthru
          _
      $region44: #{tpu_custom_call.1} parent=5 // pred_fallthru
        _
    $region6: #{tpu_custom_call.1} parent=1 // loop_footer
      %s21 = sadd.s32 1, %s17
    $region7: #{tpu_custom_call.1} parent=1 // loop_footer_branch
      %16 = sbr.rel target = $region3
    $region8: #{tpu_custom_call.1} parent=1 // loop_exit
      _
    %465 = vsyncpa [#allocation3], 1
    %s466 = scalar_lea.sflag [#allocation3], 1
    %467 = vsyncpa %s466, 1
    %468 = vsyncpa [#allocation6], 1
    %s469 = scalar_lea.sflag [#allocation6], 1
    %470 = vsyncpa %s469, 1
    %471 = vsyncpa [#allocation4], 1
    %s472 = scalar_lea.sflag [#allocation4], 1
    %473 = vsyncpa %s472, 1

</llo_original>
